<compile_context>
chip_gen: v7x
topology: tpu7x:2x2x1
jax: 0.10.0
libtpu: 0.0.40
codegen_flags: <defaults>
</compile_context>

<pallas_src>
import functools

import jax
import jax.numpy as jnp
from jax.experimental import pallas as pl
from jax.experimental.pallas import tpu as pltpu


def _spatial_gather_kernel(feats_ref, probs_ref, rowmax_ref, ctx_ref, sum_ref,
                           ctx_acc, s_acc, *, scale):
    # feats_ref : (1, TK, THW)    probs_ref : (1, C, THW)   rowmax_ref: (1, C, 1)
    # ctx_ref   : (1, TK, C)      sum_ref   : (1, C, 1)
    # ctx_acc   : (TK, C) f32     s_acc     : (C, 1) f32
    hw_step = pl.program_id(2)

    @pl.when(hw_step == 0)
    def _init():
        ctx_acc[...] = jnp.zeros_like(ctx_acc)
        s_acc[...] = jnp.zeros_like(s_acc)

    p = probs_ref[0].astype(jnp.float32)                    # (C, THW)
    if scale != 1.0:
        p = p * scale
    e = jnp.exp(p - rowmax_ref[0])                          # (C, THW), <= 1
    s_acc[...] += jnp.sum(e, axis=-1, keepdims=True)        # (C, 1)

    f = feats_ref[0]                                        # (TK, THW)
    # Contract HW: canonical f @ e.T -> (TK, C); the big feats tile is fed
    # to the MXU untransposed.  (bf16 feats => e cast to bf16; f32 stays f32.)
    ctx_acc[...] += jax.lax.dot_general(
        f, e.astype(f.dtype),
        dimension_numbers=(((1,), (1,)), ((), ())),
        preferred_element_type=jnp.float32)

    @pl.when(hw_step == pl.num_programs(2) - 1)
    def _finalize():
        ctx_ref[0] = ctx_acc[...]
        sum_ref[0] = s_acc[...]


def _vmem_capacity_bytes():
    try:
        return int(pltpu.get_tpu_info().vmem_capacity_bytes)
    except Exception:
        return 64 << 20          # conservative (v7x per-core VMEM)


def _choose_hw_tile(hw, target, user_tile):
    """Pick a 128-multiple hw tile; returns (hw_tile, hw_padded)."""
    if user_tile is not None:
        assert user_tile % 128 == 0, "hw_tile must be a multiple of 128"
        t = user_tile
        return t, ((hw + t - 1) // t) * t
    hw128 = ((hw + 127) // 128) * 128
    target = max(128, (target // 128) * 128)
    if hw128 <= target:
        return hw128, hw128
    # largest 128-multiple divisor of hw128 that fits the target
    best, t = 128, 128
    while t <= target:
        if hw128 % t == 0:
            best = t
        t += 128
    if best * 2 <= target:
        # divisibility forces a tiny tile -> pad up to `target` instead
        best = target
    return best, ((hw + best - 1) // best) * best


def spatial_gather(feats, probs, scale=1, hw_tile=None, k_tile=None):
    """JAX/Pallas equivalent of SpatialGather_Module.forward."""
    n, k, h, w = feats.shape
    nb, c, hp, wp = probs.shape
    assert n == nb and h == hp and w == wp
    hw = h * w
    scale_f = float(scale)

    f_isz = jnp.dtype(feats.dtype).itemsize
    p_isz = jnp.dtype(probs.dtype).itemsize

    # ---- generation-aware VMEM budget ---------------------------------
    vmem_cap = _vmem_capacity_bytes()
    vmem_ceiling = int(vmem_cap * 0.75)          # never request more than ~75%
    tile_budget = int(vmem_ceiling * 0.8)        # headroom for internal scratch

    # ---- K tiling ------------------------------------------------------
    if k_tile is None:
        k_tile = k
        # Megacore (2-TC parts): with batch == 1 keep >= 2 parallel tiles.
        # On 1-TC chips the split only duplicates cheap exp() work.
        if n == 1 and k >= 512 and k % 256 == 0:
            k_tile = 256
    assert k % k_tile == 0, "k_tile must divide K"
    num_k = k // k_tile

    # ---- HW tiling (big streaming tiles; DMA-bound kernel) -------------
    target = 8192 if f_isz <= 2 else 4096
    fixed = (2 * k_tile * c * 4          # ctx output double-buffer (f32)
             + k_tile * c * 4            # ctx accumulator scratch
             + 8 * c * 4                 # row max / sum blocks + scratch
             + (1 << 20))                # misc headroom
    per_hw = 2 * (k_tile * f_isz + c * p_isz)    # double-buffered feats+probs
    max_hw_tile = max(128, ((tile_budget - fixed) // per_hw) // 128 * 128)
    target = min(target, max_hw_tile)
    hw_tile, hw_pad = _choose_hw_tile(hw, target, hw_tile)
    num_hw = hw_pad // hw_tile

    feats_r = feats.reshape(n, k, hw)
    probs_r = probs.reshape(n, c, hw)

    # Exact per-(n, c) softmax max, computed once in XLA (tiny extra pass).
    if scale_f >= 0:
        stat = jnp.max(probs_r, axis=-1, keepdims=True)
    else:
        stat = jnp.min(probs_r, axis=-1, keepdims=True)
    row_max = stat.astype(jnp.float32) * scale_f            # (N, C, 1) f32

    # Pad HW so the streaming tile always divides it; padded probs columns get
    # exp() == 0 and padded feats columns are zero.
    if hw_pad != hw:
        if scale_f == 0.0:
            raise ValueError("scale == 0 with non-tile-divisible HW is unsupported")
        pad = hw_pad - hw
        feats_r = jnp.pad(feats_r, ((0, 0), (0, 0), (0, pad)))
        pad_val = -1e30 if scale_f > 0 else 1e30
        probs_r = jnp.pad(probs_r, ((0, 0), (0, 0), (0, pad)),
                          constant_values=pad_val)

    # ---- VMEM limit matching the chosen tiles ---------------------------
    est = (2 * k_tile * hw_tile * f_isz          # feats (double-buffered)
           + 2 * c * hw_tile * p_isz             # probs (double-buffered)
           + 2 * c * 4                           # row max
           + 2 * k_tile * c * 4 + 2 * c * 4      # outputs
           + k_tile * c * 4 + c * 4)             # accumulator scratch
    vmem_limit = int(min(max(2 * est, 32 << 20), vmem_ceiling))

    kernel = functools.partial(_spatial_gather_kernel, scale=scale_f)

    ctx, ssum = pl.pallas_call(
        kernel,
        out_shape=(jax.ShapeDtypeStruct((n, k, c), jnp.float32),
                   jax.ShapeDtypeStruct((n, c, 1), jnp.float32)),
        grid_spec=pltpu.PrefetchScalarGridSpec(
            num_scalar_prefetch=0,
            grid=(n, num_k, num_hw),
            in_specs=[
                # feats: stream (K-tile, HW-tile) blocks.
                pl.BlockSpec((1, k_tile, hw_tile), lambda b, kk, hh: (b, kk, hh)),
                # probs: stream (C, HW-tile) blocks (no resident full block).
                pl.BlockSpec((1, c, hw_tile), lambda b, kk, hh: (b, 0, hh)),
                # precomputed per-class softmax max (tiny, resident per batch).
                pl.BlockSpec((1, c, 1), lambda b, kk, hh: (b, 0, 0)),
            ],
            out_specs=[
                pl.BlockSpec((1, k_tile, c), lambda b, kk, hh: (b, kk, 0)),
                pl.BlockSpec((1, c, 1), lambda b, kk, hh: (b, 0, 0)),
            ],
            scratch_shapes=[
                pltpu.VMEM((k_tile, c), jnp.float32),   # ctx accumulator
                pltpu.VMEM((c, 1), jnp.float32),        # exp row-sums
            ],
        ),
        compiler_params=pltpu.CompilerParams(
            dimension_semantics=("parallel", "parallel", "arbitrary"),
            vmem_limit_bytes=vmem_limit,
        ),
    )(feats_r, probs_r, row_max)

    # Deferred softmax normalization on the tiny (N, K, C) result, then the
    # unsqueeze(3).  No transpose of the kernel output is needed.
    denom = jnp.swapaxes(ssum, 1, 2)                 # (N, 1, C)
    out = (ctx / denom).astype(feats.dtype)          # (N, K, C)
    return out[..., None]                            # (N, K, C, 1)


def _reference(feats, probs, scale=1):
    n, c = probs.shape[0], probs.shape[1]
    p = probs.reshape(n, c, -1)
    f = feats.reshape(n, feats.shape[1], -1).transpose(0, 2, 1)
    p = jax.nn.softmax(scale * p, axis=2)
    ctx = jnp.einsum("ncs,nsk->nck", p, f)
    return jnp.transpose(ctx, (0, 2, 1))[..., None]


if __name__ == "__main__":
    key = jax.random.PRNGKey(0)
    kf, kp, kf2, kp2 = jax.random.split(key, 4)

    N, K, C, H, W = 2, 8, 4, 16, 16   # batch, feat channels, classes, spatial
    feats = jax.random.normal(kf, (N, K, H, W), dtype=jnp.float32)
    probs = jax.random.normal(kp, (N, C, H, W), dtype=jnp.float32)

    # hw_tile=128 -> 2 reduction steps per (batch, k-tile): exercises accumulation.
    out = jax.block_until_ready(spatial_gather(feats, probs, scale=1, hw_tile=128))
    ref = _reference(feats, probs, scale=1)
    assert out.shape == (N, K, C, 1), out.shape
    assert jnp.allclose(out, ref, atol=1e-5, rtol=1e-5), "mismatch vs reference"

    # Auto-tiling path + non-default scale.
    out2 = jax.block_until_ready(spatial_gather(feats, probs, scale=2.0))
    ref2 = _reference(feats, probs, scale=2.0)
    assert jnp.allclose(out2, ref2, atol=1e-5, rtol=1e-5), "mismatch (scale=2)"

    # Non-128-divisible spatial size -> exercises the HW padding path.
    H3 = W3 = 13
    feats3 = jax.random.normal(kf2, (N, K, H3, W3), dtype=jnp.float32)
    probs3 = jax.random.normal(kp2, (N, C, H3, W3), dtype=jnp.float32)
    out3 = jax.block_until_ready(spatial_gather(feats3, probs3, scale=1, hw_tile=128))
    ref3 = _reference(feats3, probs3, scale=1)
    assert jnp.allclose(out3, ref3, atol=1e-5, rtol=1e-5), "mismatch (padded HW)"

    print("KERNEL_OK")
</pallas_src>

<mosaic_0001>
module attributes {stable_mosaic.version = 11 : i64} {
  func.func @_spatial_gather_kernel(%arg0: i32, %arg1: i32, %arg2: i32, %arg3: memref<1x8x128xf32, #tpu.memory_space<vmem>>, %arg4: memref<1x4x128xf32, #tpu.memory_space<vmem>>, %arg5: memref<1x4x1xf32, #tpu.memory_space<vmem>>, %arg6: memref<1x8x4xf32, #tpu.memory_space<vmem>>, %arg7: memref<1x4x1xf32, #tpu.memory_space<vmem>>, %arg8: memref<8x4xf32, #tpu.memory_space<vmem>>, %arg9: memref<4x1xf32, #tpu.memory_space<vmem>>) attributes {dimension_semantics = [#tpu.dimension_semantics<parallel>, #tpu.dimension_semantics<parallel>, #tpu.dimension_semantics<arbitrary>], iteration_bounds = array<i64: 2, 1, 2>, scalar_prefetch = 0 : i64, scratch_operands = 2 : i64, tpu.core_type = #tpu.core_type<tc>, window_params = [{transform_indices = @transform_0, window_bounds = array<i64: 1, 8, 128>}, {transform_indices = @transform_1, window_bounds = array<i64: 1, 4, 128>}, {transform_indices = @transform_2, window_bounds = array<i64: 1, 4, 1>}, {transform_indices = @transform_3, window_bounds = array<i64: 1, 8, 4>}, {transform_indices = @transform_4, window_bounds = array<i64: 1, 4, 1>}]} {
    %c0_i32 = arith.constant 0 : i32
    %0 = arith.cmpi eq, %arg2, %c0_i32 : i32
    %1 = arith.extui %0 : i1 to i32
    %c0_i32_0 = arith.constant 0 : i32
    %2 = arith.cmpi ne, %1, %c0_i32_0 : i32
    scf.if %2 {
      %cst_19 = arith.constant 0.000000e+00 : f32
      %24 = vector.broadcast %cst_19 : f32 to vector<8x4xf32>
      %c0_20 = arith.constant 0 : index
      %c0_21 = arith.constant 0 : index
      %25 = vector.load %arg8[%c0_20, %c0_21] : memref<8x4xf32, #tpu.memory_space<vmem>>, vector<8x4xf32>
      tpu.vector_store %arg8[%c0_20, %c0_21], %24 {strides = array<i32>} : memref<8x4xf32, #tpu.memory_space<vmem>>, vector<8x4xf32>,
      %cst_22 = arith.constant 0.000000e+00 : f32
      %26 = vector.broadcast %cst_22 : f32 to vector<4x1xf32>
      %c0_23 = arith.constant 0 : index
      %c0_24 = arith.constant 0 : index
      %27 = vector.load %arg9[%c0_23, %c0_24] : memref<4x1xf32, #tpu.memory_space<vmem>>, vector<4x1xf32>
      tpu.vector_store %arg9[%c0_23, %c0_24], %26 {strides = array<i32>} : memref<4x1xf32, #tpu.memory_space<vmem>>, vector<4x1xf32>,
    } else {
    }
    %c0 = arith.constant 0 : index
    %c0_1 = arith.constant 0 : index
    %c0_2 = arith.constant 0 : index
    %3 = vector.load %arg4[%c0, %c0_1, %c0_2] : memref<1x4x128xf32, #tpu.memory_space<vmem>>, vector<1x4x128xf32>
    %4 = vector.shape_cast %3 : vector<1x4x128xf32> to vector<4x128xf32>
    %c0_3 = arith.constant 0 : index
    %c0_4 = arith.constant 0 : index
    %c0_5 = arith.constant 0 : index
    %5 = vector.load %arg5[%c0_3, %c0_4, %c0_5] : memref<1x4x1xf32, #tpu.memory_space<vmem>>, vector<1x4x1xf32>
    %6 = vector.shape_cast %5 : vector<1x4x1xf32> to vector<4x1xf32>
    %7 = vector.broadcast %6 : vector<4x1xf32> to vector<4x128xf32>
    %8 = arith.subf %4, %7 : vector<4x128xf32>
    %9 = math.exp %8 : vector<4x128xf32>
    %c0_6 = arith.constant 0 : index
    %c0_7 = arith.constant 0 : index
    %10 = vector.load %arg9[%c0_6, %c0_7] : memref<4x1xf32, #tpu.memory_space<vmem>>, vector<4x1xf32>
    %cst = arith.constant dense<0.000000e+00> : vector<4xf32>
    %11 = vector.multi_reduction <add>, %9, %cst [1] : vector<4x128xf32> to vector<4xf32>
    %12 = vector.shape_cast %11 : vector<4xf32> to vector<4x1xf32>
    %13 = arith.addf %10, %12 : vector<4x1xf32>
    %c0_8 = arith.constant 0 : index
    %c0_9 = arith.constant 0 : index
    %14 = vector.load %arg9[%c0_8, %c0_9] : memref<4x1xf32, #tpu.memory_space<vmem>>, vector<4x1xf32>
    tpu.vector_store %arg9[%c0_8, %c0_9], %13 {strides = array<i32>} : memref<4x1xf32, #tpu.memory_space<vmem>>, vector<4x1xf32>,
    %c0_10 = arith.constant 0 : index
    %c0_11 = arith.constant 0 : index
    %c0_12 = arith.constant 0 : index
    %15 = vector.load %arg3[%c0_10, %c0_11, %c0_12] : memref<1x8x128xf32, #tpu.memory_space<vmem>>, vector<1x8x128xf32>
    %16 = vector.shape_cast %15 : vector<1x8x128xf32> to vector<8x128xf32>
    %c0_13 = arith.constant 0 : index
    %c0_14 = arith.constant 0 : index
    %17 = vector.load %arg8[%c0_13, %c0_14] : memref<8x4xf32, #tpu.memory_space<vmem>>, vector<8x4xf32>
    %cst_15 = arith.constant dense<0.000000e+00> : vector<8x4xf32>
    %18 = tpu.matmul %16, %9, %cst_15 {dimension_numbers = #tpu.dot_dimension_numbers<[1], [1], [0], [0], [0, 0, 1, 0], [], []>} : vector<8x128xf32>, vector<4x128xf32>, vector<8x4xf32> -> vector<8x4xf32>
    %19 = arith.addf %17, %18 : vector<8x4xf32>
    %c0_16 = arith.constant 0 : index
    %c0_17 = arith.constant 0 : index
    %20 = vector.load %arg8[%c0_16, %c0_17] : memref<8x4xf32, #tpu.memory_space<vmem>>, vector<8x4xf32>
    tpu.vector_store %arg8[%c0_16, %c0_17], %19 {strides = array<i32>} : memref<8x4xf32, #tpu.memory_space<vmem>>, vector<8x4xf32>,
    %c1_i32 = arith.constant 1 : i32
    %21 = arith.cmpi eq, %arg2, %c1_i32 : i32
    %22 = arith.extui %21 : i1 to i32
    %c0_i32_18 = arith.constant 0 : i32
    %23 = arith.cmpi ne, %22, %c0_i32_18 : i32
    scf.if %23 {
      %c0_19 = arith.constant 0 : index
      %c0_20 = arith.constant 0 : index
      %24 = vector.load %arg8[%c0_19, %c0_20] : memref<8x4xf32, #tpu.memory_space<vmem>>, vector<8x4xf32>
      %c0_21 = arith.constant 0 : index
      %c0_22 = arith.constant 0 : index
      %c0_23 = arith.constant 0 : index
      %25 = vector.load %arg6[%c0_21, %c0_22, %c0_23] : memref<1x8x4xf32, #tpu.memory_space<vmem>>, vector<1x8x4xf32>
      %26 = vector.shape_cast %25 : vector<1x8x4xf32> to vector<8x4xf32>
      %27 = vector.shape_cast %24 : vector<8x4xf32> to vector<1x8x4xf32>
      tpu.vector_store %arg6[%c0_21, %c0_22, %c0_23], %27 {strides = array<i32>} : memref<1x8x4xf32, #tpu.memory_space<vmem>>, vector<1x8x4xf32>,
      %c0_24 = arith.constant 0 : index
      %c0_25 = arith.constant 0 : index
      %28 = vector.load %arg9[%c0_24, %c0_25] : memref<4x1xf32, #tpu.memory_space<vmem>>, vector<4x1xf32>
      %c0_26 = arith.constant 0 : index
      %c0_27 = arith.constant 0 : index
      %c0_28 = arith.constant 0 : index
      %29 = vector.load %arg7[%c0_26, %c0_27, %c0_28] : memref<1x4x1xf32, #tpu.memory_space<vmem>>, vector<1x4x1xf32>
      %30 = vector.shape_cast %29 : vector<1x4x1xf32> to vector<4x1xf32>
      %31 = vector.shape_cast %28 : vector<4x1xf32> to vector<1x4x1xf32>
      tpu.vector_store %arg7[%c0_26, %c0_27, %c0_28], %31 {strides = array<i32>} : memref<1x4x1xf32, #tpu.memory_space<vmem>>, vector<1x4x1xf32>,
    } else {
    }
    return
  }
  func.func @transform_0(%arg0: i32, %arg1: i32, %arg2: i32) -> (i32, i32, i32) {
    %c0_i32 = arith.constant 0 : i32
    return %arg0, %arg1, %arg2 : i32, i32, i32
  }
  func.func @transform_1(%arg0: i32, %arg1: i32, %arg2: i32) -> (i32, i32, i32) {
    %c0_i32 = arith.constant 0 : i32
    %c0_i32_0 = arith.constant 0 : i32
    return %arg0, %c0_i32, %arg2 : i32, i32, i32
  }
  func.func @transform_2(%arg0: i32, %arg1: i32, %arg2: i32) -> (i32, i32, i32) {
    %c0_i32 = arith.constant 0 : i32
    %c0_i32_0 = arith.constant 0 : i32
    %c0_i32_1 = arith.constant 0 : i32
    return %arg0, %c0_i32, %c0_i32_0 : i32, i32, i32
  }
  func.func @transform_3(%arg0: i32, %arg1: i32, %arg2: i32) -> (i32, i32, i32) {
    %c0_i32 = arith.constant 0 : i32
    %c0_i32_0 = arith.constant 0 : i32
    return %arg0, %arg1, %c0_i32 : i32, i32, i32
  }
  func.func @transform_4(%arg0: i32, %arg1: i32, %arg2: i32) -> (i32, i32, i32) {
    %c0_i32 = arith.constant 0 : i32
    %c0_i32_0 = arith.constant 0 : i32
    %c0_i32_1 = arith.constant 0 : i32
    return %arg0, %c0_i32, %c0_i32_0 : i32, i32, i32
  }
}

</mosaic_0001>

<llo_original>
// kernel: tpu_custom_call.1
$region0: #{tpu_custom_call.1}
  #allocation0 [shape = 'u32[]', space=smem, size = 0x4, offset = 0x4, fixed_abs, tag = 'smem constant byte address 0x4 - core index']
  #allocation1 [shape = 'u32[144,128]{1,0:T(1,128)}', space=vmem, size = 0x12000, scoped, tag = 'internal scratch']
  #allocation2 [shape = 'f32[8,4]{1,0:T(8,128)}', space=vmem, size = 0x1000, scoped, tag = 'scratch operand']
  #allocation3 [shape = 'f32[4,1]{1,0:T(4,128)}', space=vmem, size = 0x800, scoped, tag = 'scratch operand']
  %s0 = inlined_call_operand.hbm [shape: f32[2,8,256], index: 0, kind: input, shape index: {}]
  %s1 = inlined_call_operand.hbm [shape: f32[2,4,256], index: 1, kind: input, shape index: {}]
  %s2 = inlined_call_operand.vmem [shape: f32[2,4,1], index: 2, kind: input, shape index: {}]
  %s3 = inlined_call_operand.vmem [shape: f32[2,8,4], index: 3, kind: output, shape index: {0}]
  %s4 = inlined_call_operand.vmem [shape: f32[2,4,1], index: 4, kind: output, shape index: {1}]
  %5 = xla_tuple %s3, %s4
  %s6 = sld [smem:[#allocation0]]
  $region69: #{tpu_custom_call.1} parent=0
    _
  %s8 = ssub.s32 1, %s6
  %s9 = scalar_select 0, %s8, %s6
  $region1: #{tpu_custom_call.1} parent=0
    #allocation4 [shape = 'u8[8192]{0}', space=vmem, size = 0x2000, scoped, tag = 'input window, operand 0']
    #allocation5 [shape = 's32[2]{0}', space=sflag, size = 0x8, scoped, tag = 'scoped memory for tpu_custom_call.1']
    #allocation6 [shape = 'u8[4096]{0}', space=vmem, size = 0x1000, scoped, tag = 'input window, operand 1']
    #allocation7 [shape = 's32[2]{0}', space=sflag, size = 0x8, scoped, tag = 'scoped memory for tpu_custom_call.1']
    %10 = vsyncpa [#allocation5], 0
    %s11 = scalar_lea.sflag [#allocation5], 1
    %12 = vsyncpa %s11, 0
    %13 = vsyncpa [#allocation7], 0
    %s14 = scalar_lea.sflag [#allocation7], 1
    %15 = vsyncpa %s14, 0
    loop: start=0, step=1, limit=6
    $region2: #{tpu_custom_call.1} parent=1 // loop_pre_header
      _
    $region3: #{tpu_custom_call.1} parent=1 // loop_header
      %s17 = sphi 0, %s21
      %p18 = scmp.ge.s32.totalorder %s17, 6
      %s24 = sphi 0, %s43
      %s25 = sphi 0, %s39
      %s26 = sphi 0, %s35
      %s27 = sphi 0, %s24
      %s28 = sphi 0, %s25
      %s29 = sphi 0, %s26
      %s30 = sphi 0, %s27
      %s31 = sphi 0, %s28
      %s32 = sphi 0, %s29
      %s50 = sphi 0, %s52
      %s53 = sphi 0, %s50
      %s54 = sphi 0, %s53
      %s70 = sphi 0, %s54
      %s78 = sphi 0, %s80
      %s81 = sphi 0, %s78
      %s82 = sphi 0, %s81
      %s98 = sphi 0, %s82
      %s104 = sphi 0, %s106
      %s107 = sphi 0, %s104
      %s108 = sphi 0, %s107
      %s124 = sphi 0, %s108
      %s132 = sphi 0, %s134
      %s135 = sphi 0, %s132
      %s136 = sphi 0, %s135
      %s152 = sphi 0, %s136
      %s158 = sphi 0, %s160
      %s161 = sphi 0, %s158
      %s162 = sphi 0, %s161
      %s178 = sphi 0, %s162
    $region4: #{tpu_custom_call.1} parent=1 // loop_header_branch
      %20 = sbr.rel (%p18) target = $region8
    $region5: #{tpu_custom_call.1} parent=1 // loop_body
      %s22 = ssub.s32 %s17, 1
      %s23 = ssub.s32 %s17, 2
      %s33 = sadd.s32 1, %s26
      %p34 = scmp.ge.s32.totalorder %s33, 2
      %s35 = scalar_select %p34, 0, %s33
      %s36 = sadd.s32 1, %s25
      %s37 = scalar_select %p34, %s36, %s25
      %p38 = scmp.ge.s32.totalorder %s37, 1
      %s39 = scalar_select %p38, 0, %s37
      %s40 = sadd.s32 1, %s24
      %s41 = scalar_select %p38, %s40, %s24
      %p42 = scmp.ge.s32.totalorder %s41, 2
      %s43 = scalar_select %p42, 0, %s41
      %s44 = ssub.s32 %s24, %s43
      %s45 = ssub.s32 %s25, %s39
      %s46 = sor.u32 %s44, %s45
      %s47 = ssub.s32 %s26, %s35
      %s48 = sor.u32 %s46, %s47
      %p49 = scmp.eq.s32.totalorder %s48, 0
      %s51 = sadd.s32 %s50, 1
      %s52 = scalar_select %p49, %s50, %s51
      %p55 = pneg %p49
      %p56 = scmp.eq.s32.totalorder %s17, 3
      %p57 = por %p55, %p56
      %p58 = scmp.ne.s32.totalorder %s50, %s53
      %p59 = scmp.eq.s32.totalorder %s17, 0
      %p60 = por %p58, %p59
      %p61 = scmp.ne.s32.totalorder %s50, %s53
      %p62 = scmp.eq.s32.totalorder %s22, 3
      %p63 = por %p61, %p62
      %p64 = scmp.ne.s32.totalorder %s53, %s54
      %p65 = scmp.eq.s32.totalorder %s22, 0
      %p66 = por %p64, %p65
      %p67 = scmp.ne.s32.totalorder %s53, %s54
      %p68 = scmp.eq.s32.totalorder %s23, 3
      %p69 = por %p67, %p68
      %p71 = scmp.ne.s32.totalorder %s54, %s70
      %p72 = scmp.eq.s32.totalorder %s23, 0
      %p73 = por %p71, %p72
      %s74 = ssub.s32 %s24, %s43
      %s75 = ssub.s32 %s26, %s35
      %s76 = sor.u32 %s74, %s75
      %p77 = scmp.eq.s32.totalorder %s76, 0
      %s79 = sadd.s32 %s78, 1
      %s80 = scalar_select %p77, %s78, %s79
      %p83 = pneg %p77
      %p84 = scmp.eq.s32.totalorder %s17, 3
      %p85 = por %p83, %p84
      %p86 = scmp.ne.s32.totalorder %s78, %s81
      %p87 = scmp.eq.s32.totalorder %s17, 0
      %p88 = por %p86, %p87
      %p89 = scmp.ne.s32.totalorder %s78, %s81
      %p90 = scmp.eq.s32.totalorder %s22, 3
      %p91 = por %p89, %p90
      %p92 = scmp.ne.s32.totalorder %s81, %s82
      %p93 = scmp.eq.s32.totalorder %s22, 0
      %p94 = por %p92, %p93
      %p95 = scmp.ne.s32.totalorder %s81, %s82
      %p96 = scmp.eq.s32.totalorder %s23, 3
      %p97 = por %p95, %p96
      %p99 = scmp.ne.s32.totalorder %s82, %s98
      %p100 = scmp.eq.s32.totalorder %s23, 0
      %p101 = por %p99, %p100
      %s102 = ssub.s32 %s24, %s43
      %p103 = scmp.eq.s32.totalorder %s102, 0
      %s105 = sadd.s32 %s104, 1
      %s106 = scalar_select %p103, %s104, %s105
      %p109 = pneg %p103
      %p110 = scmp.eq.s32.totalorder %s17, 3
      %p111 = por %p109, %p110
      %p112 = scmp.ne.s32.totalorder %s104, %s107
      %p113 = scmp.eq.s32.totalorder %s17, 0
      %p114 = por %p112, %p113
      %p115 = scmp.ne.s32.totalorder %s104, %s107
      %p116 = scmp.eq.s32.totalorder %s22, 3
      %p117 = por %p115, %p116
      %p118 = scmp.ne.s32.totalorder %s107, %s108
      %p119 = scmp.eq.s32.totalorder %s22, 0
      %p120 = por %p118, %p119
      %p121 = scmp.ne.s32.totalorder %s107, %s108
      %p122 = scmp.eq.s32.totalorder %s23, 3
      %p123 = por %p121, %p122
      %p125 = scmp.ne.s32.totalorder %s108, %s124
      %p126 = scmp.eq.s32.totalorder %s23, 0
      %p127 = por %p125, %p126
      %s128 = ssub.s32 %s24, %s43
      %s129 = ssub.s32 %s25, %s39
      %s130 = sor.u32 %s128, %s129
      %p131 = scmp.eq.s32.totalorder %s130, 0
      %s133 = sadd.s32 %s132, 1
      %s134 = scalar_select %p131, %s132, %s133
      %p137 = pneg %p131
      %p138 = scmp.eq.s32.totalorder %s17, 3
      %p139 = por %p137, %p138
      %p140 = scmp.ne.s32.totalorder %s132, %s135
      %p141 = scmp.eq.s32.totalorder %s17, 0
      %p142 = por %p140, %p141
      %p143 = scmp.ne.s32.totalorder %s132, %s135
      %p144 = scmp.eq.s32.totalorder %s22, 3
      %p145 = por %p143, %p144
      %p146 = scmp.ne.s32.totalorder %s135, %s136
      %p147 = scmp.eq.s32.totalorder %s22, 0
      %p148 = por %p146, %p147
      %p149 = scmp.ne.s32.totalorder %s135, %s136
      %p150 = scmp.eq.s32.totalorder %s23, 3
      %p151 = por %p149, %p150
      %p153 = scmp.ne.s32.totalorder %s136, %s152
      %p154 = scmp.eq.s32.totalorder %s23, 0
      %p155 = por %p153, %p154
      %s156 = ssub.s32 %s24, %s43
      %p157 = scmp.eq.s32.totalorder %s156, 0
      %s159 = sadd.s32 %s158, 1
      %s160 = scalar_select %p157, %s158, %s159
      %p163 = pneg %p157
      %p164 = scmp.eq.s32.totalorder %s17, 3
      %p165 = por %p163, %p164
      %p166 = scmp.ne.s32.totalorder %s158, %s161
      %p167 = scmp.eq.s32.totalorder %s17, 0
      %p168 = por %p166, %p167
      %p169 = scmp.ne.s32.totalorder %s158, %s161
      %p170 = scmp.eq.s32.totalorder %s22, 3
      %p171 = por %p169, %p170
      %p172 = scmp.ne.s32.totalorder %s161, %s162
      %p173 = scmp.eq.s32.totalorder %s22, 0
      %p174 = por %p172, %p173
      %p175 = scmp.ne.s32.totalorder %s161, %s162
      %p176 = scmp.eq.s32.totalorder %s23, 3
      %p177 = por %p175, %p176
      %p179 = scmp.ne.s32.totalorder %s162, %s178
      %p180 = scmp.eq.s32.totalorder %s23, 0
      %p181 = por %p179, %p180
      %p182 = scmp.le.s32.totalorder 1, %s17
      %p183 = scmp.lt.s32.totalorder %s17, 5
      %p184 = pnand %p182, %p183
      %p185 = pneg %p184
      // Predicated region
      $region9: #{tpu_custom_call.1} parent=5 // pred_check
        _
      $region10: #{tpu_custom_call.1} parent=5 // pred_check_branch
        %187 = sbr.rel (%p184) target = $region12
      $region11: #{tpu_custom_call.1} parent=5 // pred_region
        %s188 = ssub.s32 %s17, 1
      $region12: #{tpu_custom_call.1} parent=5 // pred_fallthru
        _
      %p189 = scmp.lt.s32.totalorder %s17, 4
      // Predicated region
      $region13: #{tpu_custom_call.1} parent=5 // pred_check
        %p190 = pneg %p189
      $region14: #{tpu_custom_call.1} parent=5 // pred_check_branch
        %192 = sbr.rel (%p190) target = $region16
      $region15: #{tpu_custom_call.1} parent=5 // pred_region
        // Predicated region
        $region17: #{tpu_custom_call.1} parent=15 // pred_check
          %p193 = pneg %p60
        $region18: #{tpu_custom_call.1} parent=15 // pred_check_branch
          %195 = sbr.rel (%p193) target = $region20
        $region19: #{tpu_custom_call.1} parent=15 // pred_region
          %s196 = sand.u32 %s50, 1
          %s197 = scalar_lea.sflag [#allocation5], %s196
          %s198 = sand.u32 %s50, 1
          %s199 = smul.addr %s198, 8
          %s200 = scalar_lea.vmem [#allocation4], %s199
          %s202 = ssub.s32 128, 128
          %203 = vsyncadd %s197, %s202
          %s204 = smul.addr %s25, 2
          %s205 = sadd.s32 %s26, %s204
          %s206 = smul.addr %s24, 2
          %s207 = sadd.s32 %s205, %s206
          %s208 = smul.addr %s207, 128
          %s209 = scalar_lea.hbm %s0, %s208
          %s211 = sshll.u32 %s200, 4
          %s212 = int_to_ptr.vmem [resolvable:$true] %s211
          %214 = dma.hbm_to_vmem [thread:$0]  %s209, 128, %s212, %s197
        $region20: #{tpu_custom_call.1} parent=15 // pred_fallthru
          _
        // Predicated region
        $region21: #{tpu_custom_call.1} parent=15 // pred_check
          %p215 = pneg %p88
        $region22: #{tpu_custom_call.1} parent=15 // pred_check_branch
          %217 = sbr.rel (%p215) target = $region24
        $region23: #{tpu_custom_call.1} parent=15 // pred_region
          %s218 = sand.u32 %s78, 1
          %s219 = scalar_lea.sflag [#allocation7], %s218
          %s220 = sand.u32 %s78, 1
          %s221 = smul.addr %s220, 4
          %s222 = scalar_lea.vmem [#allocation6], %s221
          %s224 = ssub.s32 64, 64
          %225 = vsyncadd %s219, %s224
          %s226 = smul.addr %s24, 2
          %s227 = sadd.s32 %s26, %s226
          %s228 = smul.addr %s227, 64
          %s229 = scalar_lea.hbm %s1, %s228
          %s231 = sshll.u32 %s222, 4
          %s232 = int_to_ptr.vmem [resolvable:$true] %s231
          %234 = dma.hbm_to_vmem [thread:$0]  %s229, 64, %s232, %s219
        $region24: #{tpu_custom_call.1} parent=15 // pred_fallthru
          _
        // Predicated region
        $region25: #{tpu_custom_call.1} parent=15 // pred_check
          %p235 = pneg %p114
        $region26: #{tpu_custom_call.1} parent=15 // pred_check_branch
          %237 = sbr.rel (%p235) target = $region28
        $region27: #{tpu_custom_call.1} parent=15 // pred_region
          %p238 = scmp.lt.s32.totalorder %s24, 1
          %s239 = scalar_select %p238, %s24, 1
          %s240 = smul.addr %s239, 4
          %s241 = scalar_lea.vmem %s2, %s240
        $region28: #{tpu_custom_call.1} parent=15 // pred_fallthru
          _
      $region16: #{tpu_custom_call.1} parent=5 // pred_fallthru
        _
      %p242 = scmp.le.s32.totalorder 1, %s17
      %p243 = scmp.lt.s32.totalorder %s17, 5
      %p244 = pnand %p242, %p243
      %p245 = pneg %p244
      // Predicated region
      $region29: #{tpu_custom_call.1} parent=5 // pred_check
        _
      $region30: #{tpu_custom_call.1} parent=5 // pred_check_branch
        %247 = sbr.rel (%p244) target = $region32
      $region31: #{tpu_custom_call.1} parent=5 // pred_region
        %s248 = ssub.s32 %s17, 1
        %s249 = sand.u32 %s53, 1
        %s250 = scalar_lea.sflag [#allocation5], %s249
        %s251 = sand.u32 %s53, 1
        %s252 = smul.addr %s251, 8
        %s253 = scalar_lea.vmem [#allocation4], %s252
        // Predicated region
        $region33: #{tpu_custom_call.1} parent=31 // pred_check
          %p254 = pneg %p66
        $region34: #{tpu_custom_call.1} parent=31 // pred_check_branch
          %256 = sbr.rel (%p254) target = $region36
        $region35: #{tpu_custom_call.1} parent=31 // pred_region
          %257 = dma.done %s250, 128
        $region36: #{tpu_custom_call.1} parent=31 // pred_fallthru
          _
        %s258 = sand.u32 %s81, 1
        %s259 = scalar_lea.sflag [#allocation7], %s258
        %s260 = sand.u32 %s81, 1
        %s261 = smul.addr %s260, 4
        %s262 = scalar_lea.vmem [#allocation6], %s261
        // Predicated region
        $region37: #{tpu_custom_call.1} parent=31 // pred_check
          %p263 = pneg %p94
        $region38: #{tpu_custom_call.1} parent=31 // pred_check_branch
          %265 = sbr.rel (%p263) target = $region40
        $region39: #{tpu_custom_call.1} parent=31 // pred_region
          %266 = dma.done %s259, 64
        $region40: #{tpu_custom_call.1} parent=31 // pred_fallthru
          _
        %s267 = sand.u32 %s53, 1
        %s268 = scalar_lea.sflag [#allocation5], %s267
        %s269 = sand.u32 %s53, 1
        %s270 = smul.addr %s269, 8
        %s271 = scalar_lea.vmem [#allocation4], %s270
        %p272 = pneg %p66
        %p273 = pneg %p63
        %s274 = sand.u32 %s81, 1
        %s275 = scalar_lea.sflag [#allocation7], %s274
        %s276 = sand.u32 %s81, 1
        %s277 = smul.addr %s276, 4
        %s278 = scalar_lea.vmem [#allocation6], %s277
        %p279 = pneg %p94
        %p280 = pneg %p91
        %p281 = scmp.lt.s32.totalorder %s27, 1
        %s282 = scalar_select %p281, %s27, 1
        %s283 = smul.addr %s282, 4
        %s284 = scalar_lea.vmem %s2, %s283
        %p285 = pneg %p120
        %p286 = pneg %p117
        %p287 = pneg %p148
        %p288 = pneg %p145
        %p289 = scmp.lt.s32.totalorder %s27, 1
        %s290 = scalar_select %p289, %s27, 1
        %p291 = scmp.lt.s32.totalorder %s28, 0
        %s292 = scalar_select %p291, %s28, 0
        %s293 = sadd.s32 %s292, %s290
        %s294 = smul.addr %s293, 8
        %s295 = scalar_lea.vmem %s3, %s294
        %p296 = pneg %p174
        %p297 = pneg %p171
        %p298 = scmp.lt.s32.totalorder %s27, 1
        %s299 = scalar_select %p298, %s27, 1
        %s300 = smul.addr %s299, 4
        %s301 = scalar_lea.vmem %s4, %s300
        %p302 = scmp.lt.s32.totalorder %s27, 1
        %s303 = scalar_select %p302, %s27, 1
        %s304 = smul.addr %s303, 4
        %s305 = scalar_lea.vmem %s2, %s304
        %p306 = scmp.lt.s32.totalorder %s27, 1
        %s307 = scalar_select %p306, %s27, 1
        %p308 = scmp.lt.s32.totalorder %s28, 0
        %s309 = scalar_select %p308, %s28, 0
        %s310 = sadd.s32 %s309, %s307
        %s311 = smul.addr %s310, 8
        %s312 = scalar_lea.vmem %s3, %s311
        %p313 = scmp.lt.s32.totalorder %s27, 1
        %s314 = scalar_select %p313, %s27, 1
        %s315 = smul.addr %s314, 4
        %s316 = scalar_lea.vmem %s4, %s315
        %p317 = scmp.eq.s32.totalorder %s29, 0
        // Predicated region
        $region41: #{tpu_custom_call.1} parent=31 // pred_check
          %p318 = pneg %p317
        $region42: #{tpu_custom_call.1} parent=31 // pred_check_branch
          %320 = sbr.rel (%p318) target = $region44
        $region43: #{tpu_custom_call.1} parent=31 // pred_region
          %vm321 = vcmask 31744
          %322 = vst.msk [vmem:[#allocation2] sm:$0xff] %vm321, 0.0
          %vm323 = vcmask 3072
          %324 = vst.msk [vmem:[#allocation3] sm:$0xf] %vm323, 0.0
        $region44: #{tpu_custom_call.1} parent=31 // pred_fallthru
          _
        %v325 = vld [vmem:[%s262] sm:$0xf]
        %v326 = vld [vmem:[%s305] sm:$0xf]
        %328 = vset.pattern.permute.xlu0 0
        %329 = vperm.xlu0 %328, %v326
        %v330 = vpop.permute.xlu0 %329
        %v332 = vsub.f32 %v325, %v330
        %v333 = vmul.f32 %v332, 1.442695
        %v334 = vpow.pop %v333
        %v335 = vld [vmem:[#allocation3] sm:$0xf]
        %vm336 = vcmask 1043456
        %v337 = vsel %vm336, %v334, 0.0
        %338 = vadd.xlane.f32.xlu0 %v337
        %v339 = vpop.xlane.xlu0 %338
        %v340 = vadd.f32 %v335, %v339
        %vm341 = vcmask 3072
        %342 = vst.msk [vmem:[#allocation3] sm:$0xf] %vm341, %v340
        %v343 = vld [vmem:[%s253] sm:$0xff]
        %v344 = vld [vmem:[#allocation2] sm:$0xff]
        %345 = vmatprep.subr.mxu0 0.0
        %346 = vmatpush1.xpose.msra.mxu0 %v334
        %347 = vmatprep.subr.mxu0 0.0
        %348 = vmatpush1.xpose.msra.mxu0 0.0
        %349 = vmatprep.subr.mxu0 0.0
        %350 = vmatpush1.xpose.msra.mxu0 0.0
        %351 = vmatprep.subr.mxu0 0.0
        %352 = vmatpush1.xpose.msra.mxu0 0.0
        %353 = vmatprep.subr.mxu0 0.0
        %354 = vmatpush1.xpose.msra.mxu0 0.0
        %355 = vmatprep.subr.mxu0 0.0
        %356 = vmatpush1.xpose.msra.mxu0 0.0
        %357 = vmatprep.subr.mxu0 0.0
        %358 = vmatpush1.xpose.msra.mxu0 0.0
        %359 = vmatprep.subr.mxu0 0.0
        %360 = vmatpush1.xpose.msra.mxu0 0.0
        %361 = vmatprep.subr.mxu0 0.0
        %362 = vmatpush1.xpose.msra.mxu0 0.0
        %363 = vmatprep.subr.mxu0 0.0
        %364 = vmatpush1.xpose.msra.mxu0 0.0
        %365 = vmatprep.subr.mxu0 0.0
        %366 = vmatpush1.xpose.msra.mxu0 0.0
        %367 = vmatprep.subr.mxu0 0.0
        %368 = vmatpush1.xpose.msra.mxu0 0.0
        %369 = vmatprep.subr.mxu0 0.0
        %370 = vmatpush1.xpose.msra.mxu0 0.0
        %371 = vmatprep.subr.mxu0 0.0
        %372 = vmatpush1.xpose.msra.mxu0 0.0
        %373 = vmatprep.subr.mxu0 0.0
        %374 = vmatpush1.xpose.msra.mxu0 0.0
        %375 = vmatprep.subr.mxu0 0.0
        %376 = vmatpush1.xpose.msra.mxu0 0.0
        %377 = vmatprep.subr.mxu0 0.0
        %378 = vmatpush1.xpose.msra.mxu0 0.0
        %379 = vmatprep.subr.mxu0 0.0
        %380 = vmatpush1.xpose.msra.mxu0 0.0
        %381 = vmatprep.subr.mxu0 0.0
        %382 = vmatpush1.xpose.msra.mxu0 0.0
        %383 = vmatprep.subr.mxu0 0.0
        %384 = vmatpush1.xpose.msra.mxu0 0.0
        %385 = vmatprep.subr.mxu0 0.0
        %386 = vmatpush1.xpose.msra.mxu0 0.0
        %387 = vmatprep.subr.mxu0 0.0
        %388 = vmatpush1.xpose.msra.mxu0 0.0
        %389 = vmatprep.subr.mxu0 0.0
        %390 = vmatpush1.xpose.msra.mxu0 0.0
        %391 = vmatprep.subr.mxu0 0.0
        %392 = vmatpush1.xpose.msra.mxu0 0.0
        %393 = vmatprep.subr.mxu0 0.0
        %394 = vmatpush1.xpose.msra.mxu0 0.0
        %395 = vmatprep.subr.mxu0 0.0
        %396 = vmatpush1.xpose.msra.mxu0 0.0
        %397 = vmatprep.subr.mxu0 0.0
        %398 = vmatpush1.xpose.msra.mxu0 0.0
        %399 = vmatprep.subr.mxu0 0.0
        %400 = vmatpush1.xpose.msra.mxu0 0.0
        %401 = vmatprep.subr.mxu0 0.0
        %402 = vmatpush1.xpose.msra.mxu0 0.0
        %403 = vmatprep.subr.mxu0 0.0
        %404 = vmatpush1.xpose.msra.mxu0 0.0
        %405 = vmatprep.subr.mxu0 0.0
        %406 = vmatpush1.xpose.msra.mxu0 0.0
        %407 = vmatprep.subr.mxu0 0.0
        %408 = vmatpush1.xpose.msra.mxu0 0.0
        %409 = vmatprep.mubr.f32.mxu0 0.0
        %410 = vmatmul.mubr.f32.gmra.mrb[0].mxu0 %v343
        %v411 = vpop.f32.mrb[0].mxu0
        %v412 = vadd.f32 0.0, %v411
        %v413 = vpop.f32.mrb[0].mxu0
        %414 = vdwg.mxu0
        %v415 = vadd.f32 %v344, %v412
        %vm416 = vcmask 31744
        %417 = vst.msk [vmem:[#allocation2] sm:$0xff] %vm416, %v415
        %p418 = scmp.eq.s32.totalorder %s29, 1
        // Predicated region
        $region45: #{tpu_custom_call.1} parent=31 // pred_check
          %p419 = pneg %p418
        $region46: #{tpu_custom_call.1} parent=31 // pred_check_branch
          %421 = sbr.rel (%p419) target = $region48
        $region47: #{tpu_custom_call.1} parent=31 // pred_region
          %v422 = vld [vmem:[#allocation2] sm:$0xff]
          %423 = vst.msk [vmem:[%s312] sm:$0xff] %vm416, %v422
          %v424 = vld [vmem:[#allocation3] sm:$0xf]
          %425 = vst.msk [vmem:[%s316] sm:$0xf] %vm341, %v424
        $region48: #{tpu_custom_call.1} parent=31 // pred_fallthru
          _
        %p426 = scmp.lt.s32.totalorder %s27, 1
        %s427 = scalar_select %p426, %s27, 1
        %p428 = scmp.lt.s32.totalorder %s28, 0
        %s429 = scalar_select %p428, %s28, 0
        %s430 = sadd.s32 %s429, %s427
        %s431 = smul.addr %s430, 8
        %s432 = scalar_lea.vmem %s3, %s431
        %p433 = scmp.lt.s32.totalorder %s27, 1
        %s434 = scalar_select %p433, %s27, 1
        %s435 = smul.addr %s434, 4
        %s436 = scalar_lea.vmem %s4, %s435
        // Predicated region
        $region49: #{tpu_custom_call.1} parent=31 // pred_check
          %p437 = pneg %p145
        $region50: #{tpu_custom_call.1} parent=31 // pred_check_branch
          %439 = sbr.rel (%p437) target = $region52
        $region51: #{tpu_custom_call.1} parent=31 // pred_region
          _
        $region52: #{tpu_custom_call.1} parent=31 // pred_fallthru
          _
        // Predicated region
        $region53: #{tpu_custom_call.1} parent=31 // pred_check
          %p440 = pneg %p171
        $region54: #{tpu_custom_call.1} parent=31 // pred_check_branch
          %442 = sbr.rel (%p440) target = $region56
        $region55: #{tpu_custom_call.1} parent=31 // pred_region
          _
        $region56: #{tpu_custom_call.1} parent=31 // pred_fallthru
          _
      $region32: #{tpu_custom_call.1} parent=5 // pred_fallthru
        _
      %p443 = scmp.le.s32.totalorder 2, %s17
      // Predicated region
      $region57: #{tpu_custom_call.1} parent=5 // pred_check
        %p444 = pneg %p443
      $region58: #{tpu_custom_call.1} parent=5 // pred_check_branch
        %446 = sbr.rel (%p444) target = $region60
      $region59: #{tpu_custom_call.1} parent=5 // pred_region
        %s447 = ssub.s32 %s17, 2
        // Predicated region
        $region61: #{tpu_custom_call.1} parent=59 // pred_check
          %p448 = pneg %p151
        $region62: #{tpu_custom_call.1} parent=59 // pred_check_branch
          %450 = sbr.rel (%p448) target = $region64
        $region63: #{tpu_custom_call.1} parent=59 // pred_region
          %p451 = scmp.lt.s32.totalorder %s30, 1
          %s452 = scalar_select %p451, %s30, 1
          %p453 = scmp.lt.s32.totalorder %s31, 0
          %s454 = scalar_select %p453, %s31, 0
          %s455 = sadd.s32 %s454, %s452
          %s456 = smul.addr %s455, 8
          %s457 = scalar_lea.vmem %s3, %s456
        $region64: #{tpu_custom_call.1} parent=59 // pred_fallthru
          _
        // Predicated region
        $region65: #{tpu_custom_call.1} parent=59 // pred_check
          %p458 = pneg %p177
        $region66: #{tpu_custom_call.1} parent=59 // pred_check_branch
          %460 = sbr.rel (%p458) target = $region68
        $region67: #{tpu_custom_call.1} parent=59 // pred_region
          %p461 = scmp.lt.s32.totalorder %s30, 1
          %s462 = scalar_select %p461, %s30, 1
          %s463 = smul.addr %s462, 4
          %s464 = scalar_lea.vmem %s4, %s463
        $region68: #{tpu_custom_call.1} parent=59 // pred_fallthru
          _
      $region60: #{tpu_custom_call.1} parent=5 // pred_fallthru
        _
    $region6: #{tpu_custom_call.1} parent=1 // loop_footer
      %s21 = sadd.s32 1, %s17
    $region7: #{tpu_custom_call.1} parent=1 // loop_footer_branch
      %16 = sbr.rel target = $region3
    $region8: #{tpu_custom_call.1} parent=1 // loop_exit
      _
    %465 = vsyncpa [#allocation5], 1
    %s466 = scalar_lea.sflag [#allocation5], 1
    %467 = vsyncpa %s466, 1
    %468 = vsyncpa [#allocation7], 1
    %s469 = scalar_lea.sflag [#allocation7], 1
    %470 = vsyncpa %s469, 1

</llo_original>
